<compile_context>
chip_gen: v5e
topology: v5e:2x2
jax: 0.10.0
libtpu: 0.0.40
codegen_flags: <defaults>
</compile_context>

<pallas_src>
import functools

import numpy as np

import jax
import jax.numpy as jnp
from jax.experimental import pallas as pl
from jax.experimental.pallas import tpu as pltpu

LANES = 128
N_LEVELS = 4  # Discretize(n_levels=4) default used inside CountPixel's model


def _target_level(pixel, n_levels):
    """Integer level k (as float) with float32(k)/float32(n-1) == float32(pixel).

    Returns -1.0 when `pixel` is not exactly a representable discretization
    level, in which case the original module counts 0 everywhere.
    """
    p = np.float32(pixel)
    for k in range(n_levels):
        if np.float32(np.float32(k) / np.float32(n_levels - 1)) == p:
            return float(k)
    return -1.0


def _pick_channel_tile(c, plane_bytes, cap_bytes=1 << 20):
    """Largest divisor of c whose per-step block stays under cap_bytes."""
    tc = 1
    for d in range(1, c + 1):
        if c % d == 0 and d * plane_bytes <= cap_bytes:
            tc = d
    return tc


def _count_pixel_kernel(x_ref, o_ref, acc_ref, *, target_level, n_minus_1,
                        n_valid, padded):
    j = pl.program_id(1)  # channel-tile (reduction) axis

    @pl.when(j == 0)
    def _init():
        acc_ref[...] = jnp.zeros_like(acc_ref)

    # (tc, R, 128) lane-dense block; clamp(min=0) of Normalize.
    t = jnp.maximum(x_ref[...].astype(jnp.float32), 0.0)

    if padded:
        # Mask the padded tail of the flattened H*W plane.
        flat = (jax.lax.broadcasted_iota(jnp.int32, t.shape, 1) * t.shape[2]
                + jax.lax.broadcasted_iota(jnp.int32, t.shape, 2))
        valid = flat < n_valid
        t_lo = jnp.where(valid, t, jnp.inf)
        t_hi = jnp.where(valid, t, -jnp.inf)
    else:
        valid = None
        t_lo = t
        t_hi = t

    # Per-channel min/max over the whole (R, 128) plane (== torch min/max over
    # dim=3 then dim=2 with keepdim).
    t_min = jnp.min(jnp.min(t_lo, axis=2, keepdims=True), axis=1, keepdims=True)
    t_max = jnp.max(jnp.max(t_hi, axis=2, keepdims=True), axis=1, keepdims=True)

    # Normalize + Discretize with the divide hoisted to (tc,1,1) scalars.
    scale = n_minus_1 / (t_max - t_min)          # tiny per-channel divide
    level = jnp.round((t - t_min) * scale)       # bucket index per pixel

    eq = level == target_level
    if padded:
        eq = jnp.logical_and(eq, valid)
    cnt = jnp.sum(
        jnp.sum(jnp.sum(eq.astype(jnp.float32), axis=2, keepdims=True),
                axis=1, keepdims=True),
        axis=0, keepdims=True)                   # (1, 1, 1)

    acc_ref[...] += cnt[0]                       # broadcast into (1, 128)

    @pl.when(j == pl.num_programs(1) - 1)
    def _finalize():
        o_ref[...] = acc_ref[...]                # lane-dense single writeback


def count_pixel(x, pixel, n_levels=N_LEVELS):
    """Pallas implementation of CountPixel(pixel).forward(x). x: (B, C, H, W)."""
    b, c, h, w = x.shape
    hw = h * w
    r = pl.cdiv(hw, LANES)
    padded_hw = r * LANES
    padded = padded_hw != hw

    # Lane-dense layout: flatten H*W and present 128 full lanes per row.
    xf = x.reshape(b, c, hw)
    if padded:
        xf = jnp.pad(xf, ((0, 0), (0, 0), (0, padded_hw - hw)))
    xr = xf.reshape(b, c, r, LANES)

    plane_bytes = r * LANES * 4  # one f32 channel plane in VMEM
    tc = _pick_channel_tile(c, plane_bytes)

    kernel = functools.partial(
        _count_pixel_kernel,
        target_level=_target_level(pixel, n_levels),
        n_minus_1=float(n_levels - 1),
        n_valid=hw,
        padded=padded,
    )

    out = pl.pallas_call(
        kernel,
        out_shape=jax.ShapeDtypeStruct((b, 1, LANES), jnp.float32),
        grid=(b, c // tc),
        in_specs=[pl.BlockSpec((None, tc, r, LANES), lambda i, j: (i, j, 0, 0))],
        out_specs=pl.BlockSpec((None, 1, LANES), lambda i, j: (i, 0, 0)),
        scratch_shapes=[pltpu.VMEM((1, LANES), jnp.float32)],
        compiler_params=pltpu.CompilerParams(
            dimension_semantics=("parallel", "arbitrary"),
            vmem_limit_bytes=32 * 1024 * 1024,
        ),
    )(xr)
    return out[:, 0, 0]  # (B,) float32, matches .type(Tensor)


def count_pixel_ref(x, pixel, n_levels=N_LEVELS):
    """Pure-JAX faithful reference of the PyTorch forward (for verification)."""
    t = jnp.maximum(x.astype(jnp.float32), 0.0)
    t_min = jnp.min(t, axis=(2, 3), keepdims=True)
    t_max = jnp.max(t, axis=(2, 3), keepdims=True)
    t = (t - t_min) / (t_max - t_min)
    t = jnp.round(t * (n_levels - 1)) / (n_levels - 1)
    return jnp.sum((t == jnp.float32(pixel)).astype(jnp.float32), axis=(1, 2, 3))


if __name__ == "__main__":
    # CountPixel has no learned weights; its only parameter is `pixel`.
    key = jax.random.PRNGKey(0)
    B, C, H, W = 2, 4, 16, 16
    x = jax.random.uniform(
        key, (B, C, H, W), dtype=jnp.float32, minval=-0.5, maxval=1.5
    )
    pixel = 2.0 / 3.0  # count pixels that discretize to level 2 of 4

    out = count_pixel(x, pixel)
    out = jax.block_until_ready(out)

    ref = count_pixel_ref(x, pixel)
    assert out.shape == (B,) and out.dtype == jnp.float32
    assert jnp.allclose(out, ref), (out, ref)
    print("KERNEL_OK")
</pallas_src>

<mosaic_0001>
module attributes {stable_mosaic.version = 11 : i64} {
  func.func @_count_pixel_kernel(%arg0: i32, %arg1: i32, %arg2: memref<1x4x2x128xf32, #tpu.memory_space<vmem>>, %arg3: memref<1x1x128xf32, #tpu.memory_space<vmem>>, %arg4: memref<1x128xf32, #tpu.memory_space<vmem>>) attributes {dimension_semantics = [#tpu.dimension_semantics<parallel>, #tpu.dimension_semantics<arbitrary>], iteration_bounds = array<i64: 2, 1>, scalar_prefetch = 0 : i64, scratch_operands = 1 : i64, tpu.core_type = #tpu.core_type<tc>, window_params = [{transform_indices = @transform_0, window_bounds = array<i64: 1, 4, 2, 128>}, {transform_indices = @transform_1, window_bounds = array<i64: 1, 1, 128>}]} {
    %c0_i32 = arith.constant 0 : i32
    %0 = arith.cmpi eq, %arg1, %c0_i32 : i32
    %1 = arith.extui %0 : i1 to i32
    %c0_i32_0 = arith.constant 0 : i32
    %2 = arith.cmpi ne, %1, %c0_i32_0 : i32
    scf.if %2 {
      %cst_19 = arith.constant 0.000000e+00 : f32
      %41 = vector.broadcast %cst_19 : f32 to vector<1x128xf32>
      %c0_20 = arith.constant 0 : index
      %c0_21 = arith.constant 0 : index
      %42 = vector.load %arg4[%c0_20, %c0_21] : memref<1x128xf32, #tpu.memory_space<vmem>>, vector<1x128xf32>
      tpu.vector_store %arg4[%c0_20, %c0_21], %41 {strides = array<i32>} : memref<1x128xf32, #tpu.memory_space<vmem>>, vector<1x128xf32>,
    } else {
    }
    %c0 = arith.constant 0 : index
    %c0_1 = arith.constant 0 : index
    %c0_2 = arith.constant 0 : index
    %c0_3 = arith.constant 0 : index
    %3 = vector.load %arg2[%c0, %c0_1, %c0_2, %c0_3] : memref<1x4x2x128xf32, #tpu.memory_space<vmem>>, vector<1x4x2x128xf32>
    %4 = vector.shape_cast %3 : vector<1x4x2x128xf32> to vector<4x2x128xf32>
    %cst = arith.constant 0.000000e+00 : f32
    %5 = vector.broadcast %cst : f32 to vector<4x2x128xf32>
    %6 = arith.maximumf %4, %5 : vector<4x2x128xf32>
    %cst_4 = arith.constant dense<0x7F800000> : vector<4x2xf32>
    %7 = vector.multi_reduction <minimumf>, %6, %cst_4 [2] : vector<4x2x128xf32> to vector<4x2xf32>
    %8 = vector.shape_cast %7 : vector<4x2xf32> to vector<4x2x1xf32>
    %cst_5 = arith.constant dense<0x7F800000> : vector<4x1xf32>
    %9 = vector.multi_reduction <minimumf>, %8, %cst_5 [1] : vector<4x2x1xf32> to vector<4x1xf32>
    %10 = vector.shape_cast %9 : vector<4x1xf32> to vector<4x1x1xf32>
    %cst_6 = arith.constant dense<0xFF800000> : vector<4x2xf32>
    %11 = vector.multi_reduction <maximumf>, %6, %cst_6 [2] : vector<4x2x128xf32> to vector<4x2xf32>
    %12 = vector.shape_cast %11 : vector<4x2xf32> to vector<4x2x1xf32>
    %cst_7 = arith.constant dense<0xFF800000> : vector<4x1xf32>
    %13 = vector.multi_reduction <maximumf>, %12, %cst_7 [1] : vector<4x2x1xf32> to vector<4x1xf32>
    %14 = vector.shape_cast %13 : vector<4x1xf32> to vector<4x1x1xf32>
    %15 = arith.subf %14, %10 : vector<4x1x1xf32>
    %cst_8 = arith.constant 3.000000e+00 : f32
    %16 = vector.broadcast %cst_8 : f32 to vector<4x1x1xf32>
    %17 = arith.divf %16, %15 : vector<4x1x1xf32>
    %18 = vector.broadcast %10 : vector<4x1x1xf32> to vector<4x2x128xf32>
    %19 = arith.subf %6, %18 : vector<4x2x128xf32>
    %20 = vector.broadcast %17 : vector<4x1x1xf32> to vector<4x2x128xf32>
    %21 = arith.mulf %19, %20 : vector<4x2x128xf32>
    %22 = math.roundeven %21 : vector<4x2x128xf32>
    %cst_9 = arith.constant 2.000000e+00 : f32
    %23 = vector.broadcast %cst_9 : f32 to vector<4x2x128xf32>
    %24 = arith.cmpf oeq, %22, %23 : vector<4x2x128xf32>
    %25 = arith.extui %24 : vector<4x2x128xi1> to vector<4x2x128xi32>
    %26 = arith.sitofp %25 : vector<4x2x128xi32> to vector<4x2x128xf32>
    %cst_10 = arith.constant dense<0.000000e+00> : vector<4x2xf32>
    %27 = vector.multi_reduction <add>, %26, %cst_10 [2] : vector<4x2x128xf32> to vector<4x2xf32>
    %28 = vector.shape_cast %27 : vector<4x2xf32> to vector<4x2x1xf32>
    %cst_11 = arith.constant dense<0.000000e+00> : vector<4x1xf32>
    %29 = vector.multi_reduction <add>, %28, %cst_11 [1] : vector<4x2x1xf32> to vector<4x1xf32>
    %30 = vector.shape_cast %29 : vector<4x1xf32> to vector<4x1x1xf32>
    %cst_12 = arith.constant dense<0.000000e+00> : vector<1x1xf32>
    %31 = vector.multi_reduction <add>, %30, %cst_12 [0] : vector<4x1x1xf32> to vector<1x1xf32>
    %32 = vector.shape_cast %31 : vector<1x1xf32> to vector<1x1x1xf32>
    %c0_13 = arith.constant 0 : index
    %c0_14 = arith.constant 0 : index
    %33 = vector.load %arg4[%c0_13, %c0_14] : memref<1x128xf32, #tpu.memory_space<vmem>>, vector<1x128xf32>
    %34 = vector.shape_cast %32 : vector<1x1x1xf32> to vector<1x1xf32>
    %35 = vector.broadcast %34 : vector<1x1xf32> to vector<1x128xf32>
    %36 = arith.addf %33, %35 : vector<1x128xf32>
    %c0_15 = arith.constant 0 : index
    %c0_16 = arith.constant 0 : index
    %37 = vector.load %arg4[%c0_15, %c0_16] : memref<1x128xf32, #tpu.memory_space<vmem>>, vector<1x128xf32>
    tpu.vector_store %arg4[%c0_15, %c0_16], %36 {strides = array<i32>} : memref<1x128xf32, #tpu.memory_space<vmem>>, vector<1x128xf32>,
    %c0_i32_17 = arith.constant 0 : i32
    %38 = arith.cmpi eq, %arg1, %c0_i32_17 : i32
    %39 = arith.extui %38 : i1 to i32
    %c0_i32_18 = arith.constant 0 : i32
    %40 = arith.cmpi ne, %39, %c0_i32_18 : i32
    scf.if %40 {
      %c0_19 = arith.constant 0 : index
      %c0_20 = arith.constant 0 : index
      %41 = vector.load %arg4[%c0_19, %c0_20] : memref<1x128xf32, #tpu.memory_space<vmem>>, vector<1x128xf32>
      %c0_21 = arith.constant 0 : index
      %c0_22 = arith.constant 0 : index
      %c0_23 = arith.constant 0 : index
      %42 = vector.load %arg3[%c0_21, %c0_22, %c0_23] : memref<1x1x128xf32, #tpu.memory_space<vmem>>, vector<1x1x128xf32>
      %43 = vector.shape_cast %42 : vector<1x1x128xf32> to vector<1x128xf32>
      %44 = vector.shape_cast %41 : vector<1x128xf32> to vector<1x1x128xf32>
      tpu.vector_store %arg3[%c0_21, %c0_22, %c0_23], %44 {strides = array<i32>} : memref<1x1x128xf32, #tpu.memory_space<vmem>>, vector<1x1x128xf32>,
    } else {
    }
    return
  }
  func.func @transform_0(%arg0: i32, %arg1: i32) -> (i32, i32, i32, i32) {
    %c0_i32 = arith.constant 0 : i32
    %c0_i32_0 = arith.constant 0 : i32
    %c0_i32_1 = arith.constant 0 : i32
    return %arg0, %arg1, %c0_i32, %c0_i32_0 : i32, i32, i32, i32
  }
  func.func @transform_1(%arg0: i32, %arg1: i32) -> (i32, i32, i32) {
    %c0_i32 = arith.constant 0 : i32
    %c0_i32_0 = arith.constant 0 : i32
    %c0_i32_1 = arith.constant 0 : i32
    return %arg0, %c0_i32, %c0_i32_0 : i32, i32, i32
  }
}

</mosaic_0001>

<llo_original>
// kernel: tpu_custom_call.1
$region0: #{tpu_custom_call.1}
  #allocation0 [shape = 'u32[]', space=smem, size = 0x4, offset = 0x4, fixed_abs, tag = 'smem constant byte address 0x4 - core index']
  #allocation1 [shape = 'u32[72,128]{1,0:T(1,128)}', space=vmem, size = 0x9000, scoped, tag = 'internal scratch']
  #allocation2 [shape = 'f32[1,128]{1,0:T(1,128)}', space=vmem, size = 0x200, scoped, tag = 'scratch operand']
  %s0 = inlined_call_operand.hbm [shape: f32[2,4,2,128], index: 0, kind: input, shape index: {}]
  %s1 = inlined_call_operand.hbm [shape: f32[2,1,128], index: 1, kind: output, shape index: {}]
  %s2 = sld [smem:[#allocation0]]
  $region49: #{tpu_custom_call.1} parent=0
    _
  %s4 = ssub.s32 1, %s2
  %s5 = scalar_select 0, %s4, %s2
  $region1: #{tpu_custom_call.1} parent=0
    #allocation3 [shape = 'u8[8192]{0}', space=vmem, size = 0x2000, scoped, tag = 'input window, operand 0']
    #allocation4 [shape = 's32[2]{0}', space=sflag, size = 0x8, scoped, tag = 'scoped memory for tpu_custom_call.1']
    #allocation5 [shape = 's32[2]{0}', space=sflag, size = 0x8, scoped, tag = 'scoped memory for tpu_custom_call.1']
    #allocation6 [shape = 'u8[1024]{0}', space=vmem, size = 0x400, scoped, tag = 'output window, operand 0']
    %6 = vsyncpa [#allocation4], 0
    %s7 = scalar_lea.sflag [#allocation4], 1
    %8 = vsyncpa %s7, 0
    %9 = vsyncpa [#allocation5], 0
    %s10 = scalar_lea.sflag [#allocation5], 1
    %11 = vsyncpa %s10, 0
    loop: start=0, step=1, limit=4
    $region2: #{tpu_custom_call.1} parent=1 // loop_pre_header
      _
    $region3: #{tpu_custom_call.1} parent=1 // loop_header
      %s13 = sphi 0, %s17
      %p14 = scmp.ge.s32.totalorder %s13, 4
      %s20 = sphi 0, %s32
      %s21 = sphi 0, %s28
      %s22 = sphi 0, %s20
      %s23 = sphi 0, %s21
      %s24 = sphi 0, %s22
      %s25 = sphi 0, %s23
      %s37 = sphi 0, %s39
      %s40 = sphi 0, %s37
      %s41 = sphi 0, %s40
      %s57 = sphi 0, %s41
      %s63 = sphi 0, %s65
      %s66 = sphi 0, %s63
      %s67 = sphi 0, %s66
      %s83 = sphi 0, %s67
    $region4: #{tpu_custom_call.1} parent=1 // loop_header_branch
      %16 = sbr.rel (%p14) target = $region8
    $region5: #{tpu_custom_call.1} parent=1 // loop_body
      %s18 = ssub.s32 %s13, 1
      %s19 = ssub.s32 %s13, 2
      %s26 = sadd.s32 1, %s21
      %p27 = scmp.ge.s32.totalorder %s26, 1
      %s28 = scalar_select %p27, 0, %s26
      %s29 = sadd.s32 1, %s20
      %s30 = scalar_select %p27, %s29, %s20
      %p31 = scmp.ge.s32.totalorder %s30, 2
      %s32 = scalar_select %p31, 0, %s30
      %s33 = ssub.s32 %s20, %s32
      %s34 = ssub.s32 %s21, %s28
      %s35 = sor.u32 %s33, %s34
      %p36 = scmp.eq.s32.totalorder %s35, 0
      %s38 = sadd.s32 %s37, 1
      %s39 = scalar_select %p36, %s37, %s38
      %p42 = pneg %p36
      %p43 = scmp.eq.s32.totalorder %s13, 1
      %p44 = por %p42, %p43
      %p45 = scmp.ne.s32.totalorder %s37, %s40
      %p46 = scmp.eq.s32.totalorder %s13, 0
      %p47 = por %p45, %p46
      %p48 = scmp.ne.s32.totalorder %s37, %s40
      %p49 = scmp.eq.s32.totalorder %s18, 1
      %p50 = por %p48, %p49
      %p51 = scmp.ne.s32.totalorder %s40, %s41
      %p52 = scmp.eq.s32.totalorder %s18, 0
      %p53 = por %p51, %p52
      %p54 = scmp.ne.s32.totalorder %s40, %s41
      %p55 = scmp.eq.s32.totalorder %s19, 1
      %p56 = por %p54, %p55
      %p58 = scmp.ne.s32.totalorder %s41, %s57
      %p59 = scmp.eq.s32.totalorder %s19, 0
      %p60 = por %p58, %p59
      %s61 = ssub.s32 %s20, %s32
      %p62 = scmp.eq.s32.totalorder %s61, 0
      %s64 = sadd.s32 %s63, 1
      %s65 = scalar_select %p62, %s63, %s64
      %p68 = pneg %p62
      %p69 = scmp.eq.s32.totalorder %s13, 1
      %p70 = por %p68, %p69
      %p71 = scmp.ne.s32.totalorder %s63, %s66
      %p72 = scmp.eq.s32.totalorder %s13, 0
      %p73 = por %p71, %p72
      %p74 = scmp.ne.s32.totalorder %s63, %s66
      %p75 = scmp.eq.s32.totalorder %s18, 1
      %p76 = por %p74, %p75
      %p77 = scmp.ne.s32.totalorder %s66, %s67
      %p78 = scmp.eq.s32.totalorder %s18, 0
      %p79 = por %p77, %p78
      %p80 = scmp.ne.s32.totalorder %s66, %s67
      %p81 = scmp.eq.s32.totalorder %s19, 1
      %p82 = por %p80, %p81
      %p84 = scmp.ne.s32.totalorder %s67, %s83
      %p85 = scmp.eq.s32.totalorder %s19, 0
      %p86 = por %p84, %p85
      %p87 = scmp.le.s32.totalorder 1, %s13
      %p88 = scmp.lt.s32.totalorder %s13, 3
      %p89 = pnand %p87, %p88
      %p90 = pneg %p89
      // Predicated region
      $region9: #{tpu_custom_call.1} parent=5 // pred_check
        _
      $region10: #{tpu_custom_call.1} parent=5 // pred_check_branch
        %92 = sbr.rel (%p89) target = $region12
      $region11: #{tpu_custom_call.1} parent=5 // pred_region
        %s93 = ssub.s32 %s13, 1
      $region12: #{tpu_custom_call.1} parent=5 // pred_fallthru
        _
      %p94 = scmp.lt.s32.totalorder %s13, 2
      // Predicated region
      $region13: #{tpu_custom_call.1} parent=5 // pred_check
        %p95 = pneg %p94
      $region14: #{tpu_custom_call.1} parent=5 // pred_check_branch
        %97 = sbr.rel (%p95) target = $region16
      $region15: #{tpu_custom_call.1} parent=5 // pred_region
        // Predicated region
        $region17: #{tpu_custom_call.1} parent=15 // pred_check
          %p98 = pneg %p47
        $region18: #{tpu_custom_call.1} parent=15 // pred_check_branch
          %100 = sbr.rel (%p98) target = $region20
        $region19: #{tpu_custom_call.1} parent=15 // pred_region
          %s101 = sand.u32 %s37, 1
          %s102 = scalar_lea.sflag [#allocation4], %s101
          %s103 = sand.u32 %s37, 1
          %s104 = smul.addr %s103, 8
          %s105 = scalar_lea.vmem [#allocation3], %s104
          %s106 = smul.u32 4, %s21
          %108 = vsyncadd %s102, 0
          %s109 = smul.addr %s20, 4
          %s110 = sadd.s32 %s106, %s109
          %s111 = smul.addr %s110, 2
          %s112 = scalar_lea.hbm %s0, %s111
          %s113 = sshll.u32 %s112, 4
          %s114 = int_to_ptr.hbm [resolvable:$true] %s113
          %s115 = sshll.u32 %s105, 4
          %s116 = int_to_ptr.vmem [resolvable:$true] %s115
          %121 = dma.hbm_to_vmem [thread:$0]  %s114, 128, %s116, %s102, 32, 32, 2
        $region20: #{tpu_custom_call.1} parent=15 // pred_fallthru
          _
      $region16: #{tpu_custom_call.1} parent=5 // pred_fallthru
        _
      %p122 = scmp.le.s32.totalorder 1, %s13
      %p123 = scmp.lt.s32.totalorder %s13, 3
      %p124 = pnand %p122, %p123
      %p125 = pneg %p124
      // Predicated region
      $region21: #{tpu_custom_call.1} parent=5 // pred_check
        _
      $region22: #{tpu_custom_call.1} parent=5 // pred_check_branch
        %127 = sbr.rel (%p124) target = $region24
      $region23: #{tpu_custom_call.1} parent=5 // pred_region
        %s128 = ssub.s32 %s13, 1
        %s129 = sand.u32 %s40, 1
        %s130 = scalar_lea.sflag [#allocation4], %s129
        %s131 = sand.u32 %s40, 1
        %s132 = smul.addr %s131, 8
        %s133 = scalar_lea.vmem [#allocation3], %s132
        // Predicated region
        $region25: #{tpu_custom_call.1} parent=23 // pred_check
          %p134 = pneg %p53
        $region26: #{tpu_custom_call.1} parent=23 // pred_check_branch
          %136 = sbr.rel (%p134) target = $region28
        $region27: #{tpu_custom_call.1} parent=23 // pred_region
          %138 = dma.done %s130, 128
        $region28: #{tpu_custom_call.1} parent=23 // pred_fallthru
          _
        %s139 = sand.u32 %s40, 1
        %s140 = scalar_lea.sflag [#allocation4], %s139
        %s141 = sand.u32 %s40, 1
        %s142 = smul.addr %s141, 8
        %s143 = scalar_lea.vmem [#allocation3], %s142
        %p144 = pneg %p53
        %p145 = pneg %p50
        %p146 = pneg %p79
        %p147 = pneg %p76
        %s148 = sand.u32 %s66, 1
        %s149 = scalar_lea.sflag [#allocation5], %s148
        %s150 = sand.u32 %s66, 1
        %s151 = scalar_lea.vmem [#allocation6], %s150
        %s152 = smul.u32 4, %s23
        %p153 = scmp.eq.s32.totalorder %s23, 0
        // Predicated region
        $region29: #{tpu_custom_call.1} parent=23 // pred_check
          %p154 = pneg %p153
        $region30: #{tpu_custom_call.1} parent=23 // pred_check_branch
          %156 = sbr.rel (%p154) target = $region32
        $region31: #{tpu_custom_call.1} parent=23 // pred_region
          %157 = vst [vmem:[#allocation2] sm:$0x1] 0.0
        $region32: #{tpu_custom_call.1} parent=23 // pred_fallthru
          _
        %v158 = vld [vmem:[%s133] sm:$0x3]
        %v159 = vld [vmem:[%s133 + $0x2] sm:$0x3]
        %v160 = vld [vmem:[%s133 + $0x4] sm:$0x3]
        %v161 = vld [vmem:[%s133 + $0x6] sm:$0x3]
        %v162 = vmax.f32 %v158, 0.0
        %v163 = vmax.f32 %v159, 0.0
        %v164 = vmax.f32 %v160, 0.0
        %v165 = vmax.f32 %v161, 0.0
        %vm166 = vcmask 1041408
        %v167 = vsel %vm166, %v162, inf
        %168 = vmin.xlane.f32.xlu0 %v167
        %v169 = vpop.xlane.xlu0 %168
        %v170 = vsel %vm166, %v163, inf
        %171 = vmin.xlane.f32.xlu0 %v170
        %v172 = vpop.xlane.xlu0 %171
        %v173 = vsel %vm166, %v164, inf
        %174 = vmin.xlane.f32.xlu0 %v173
        %v175 = vpop.xlane.xlu0 %174
        %v176 = vsel %vm166, %v165, inf
        %177 = vmin.xlane.f32.xlu0 %v176
        %v178 = vpop.xlane.xlu0 %177
        %v179 = vsel %vm166, %v169, inf
        %v180 = vrot.slane %v179, 4
        %v181 = vmin.f32 %v179, %v180
        %v182 = vrot.slane %v181, 2
        %v183 = vmin.f32 %v181, %v182
        %v184 = vrot.slane %v183, 1
        %v185 = vmin.f32 %v183, %v184
        %v186 = vsel %vm166, %v172, inf
        %v187 = vrot.slane %v186, 4
        %v188 = vmin.f32 %v186, %v187
        %v189 = vrot.slane %v188, 2
        %v190 = vmin.f32 %v188, %v189
        %v191 = vrot.slane %v190, 1
        %v192 = vmin.f32 %v190, %v191
        %v193 = vsel %vm166, %v175, inf
        %v194 = vrot.slane %v193, 4
        %v195 = vmin.f32 %v193, %v194
        %v196 = vrot.slane %v195, 2
        %v197 = vmin.f32 %v195, %v196
        %v198 = vrot.slane %v197, 1
        %v199 = vmin.f32 %v197, %v198
        %v200 = vsel %vm166, %v178, inf
        %v201 = vrot.slane %v200, 4
        %v202 = vmin.f32 %v200, %v201
        %v203 = vrot.slane %v202, 2
        %v204 = vmin.f32 %v202, %v203
        %v205 = vrot.slane %v204, 1
        %v206 = vmin.f32 %v204, %v205
        %v207 = vsel %vm166, %v162, -inf
        %208 = vmax.xlane.f32.xlu0 %v207
        %v209 = vpop.xlane.xlu0 %208
        %v210 = vsel %vm166, %v163, -inf
        %211 = vmax.xlane.f32.xlu0 %v210
        %v212 = vpop.xlane.xlu0 %211
        %v213 = vsel %vm166, %v164, -inf
        %214 = vmax.xlane.f32.xlu0 %v213
        %v215 = vpop.xlane.xlu0 %214
        %v216 = vsel %vm166, %v165, -inf
        %217 = vmax.xlane.f32.xlu0 %v216
        %v218 = vpop.xlane.xlu0 %217
        %v219 = vsel %vm166, %v209, -inf
        %v220 = vrot.slane %v219, 4
        %v221 = vmax.f32 %v219, %v220
        %v222 = vrot.slane %v221, 2
        %v223 = vmax.f32 %v221, %v222
        %v224 = vrot.slane %v223, 1
        %v225 = vmax.f32 %v223, %v224
        %v226 = vsel %vm166, %v212, -inf
        %v227 = vrot.slane %v226, 4
        %v228 = vmax.f32 %v226, %v227
        %v229 = vrot.slane %v228, 2
        %v230 = vmax.f32 %v228, %v229
        %v231 = vrot.slane %v230, 1
        %v232 = vmax.f32 %v230, %v231
        %v233 = vsel %vm166, %v215, -inf
        %v234 = vrot.slane %v233, 4
        %v235 = vmax.f32 %v233, %v234
        %v236 = vrot.slane %v235, 2
        %v237 = vmax.f32 %v235, %v236
        %v238 = vrot.slane %v237, 1
        %v239 = vmax.f32 %v237, %v238
        %v240 = vsel %vm166, %v218, -inf
        %v241 = vrot.slane %v240, 4
        %v242 = vmax.f32 %v240, %v241
        %v243 = vrot.slane %v242, 2
        %v244 = vmax.f32 %v242, %v243
        %v245 = vrot.slane %v244, 1
        %v246 = vmax.f32 %v244, %v245
        %v247 = vsub.f32 %v225, %v185
        %v248 = vsub.f32 %v232, %v192
        %v249 = vsub.f32 %v239, %v199
        %v250 = vsub.f32 %v246, %v206
        %v251 = vrcp.pop %v247
        %v252 = vmul.f32 %v247, %v251
        %v253 = vsub.f32 1.0, %v252
        %v254 = vmul.f32 %v251, %v253
        %v255 = vadd.f32 %v251, %v254
        %vm256 = vweird.f32 %v247
        %vm257 = vweird.f32 %v251
        %vm258 = vmor %vm256, %vm257
        %v259 = vsel %vm258, %v251, %v255
        %v260 = vand.u32 2147483647, %v247
        %vm261 = vcmp.eq.f32.partialorder %v260, 8.507059e+37
        %v262 = vand.u32 %v247, 2147483648
        %v263 = vor.u32 1.1754944e-38, %v262
        %v264 = vsel %vm261, %v263, %v259
        %v265 = vmul.f32 3.0, %v264
        %v266 = vrcp.pop %v248
        %v267 = vmul.f32 %v248, %v266
        %v268 = vsub.f32 1.0, %v267
        %v269 = vmul.f32 %v266, %v268
        %v270 = vadd.f32 %v266, %v269
        %vm271 = vweird.f32 %v248
        %vm272 = vweird.f32 %v266
        %vm273 = vmor %vm271, %vm272
        %v274 = vsel %vm273, %v266, %v270
        %v275 = vand.u32 2147483647, %v248
        %vm276 = vcmp.eq.f32.partialorder %v275, 8.507059e+37
        %v277 = vand.u32 %v248, 2147483648
        %v278 = vor.u32 1.1754944e-38, %v277
        %v279 = vsel %vm276, %v278, %v274
        %v280 = vmul.f32 3.0, %v279
        %v281 = vrcp.pop %v249
        %v282 = vmul.f32 %v249, %v281
        %v283 = vsub.f32 1.0, %v282
        %v284 = vmul.f32 %v281, %v283
        %v285 = vadd.f32 %v281, %v284
        %vm286 = vweird.f32 %v249
        %vm287 = vweird.f32 %v281
        %vm288 = vmor %vm286, %vm287
        %v289 = vsel %vm288, %v281, %v285
        %v290 = vand.u32 2147483647, %v249
        %vm291 = vcmp.eq.f32.partialorder %v290, 8.507059e+37
        %v292 = vand.u32 %v249, 2147483648
        %v293 = vor.u32 1.1754944e-38, %v292
        %v294 = vsel %vm291, %v293, %v289
        %v295 = vmul.f32 3.0, %v294
        %v296 = vrcp.pop %v250
        %v297 = vmul.f32 %v250, %v296
        %v298 = vsub.f32 1.0, %v297
        %v299 = vmul.f32 %v296, %v298
        %v300 = vadd.f32 %v296, %v299
        %vm301 = vweird.f32 %v250
        %vm302 = vweird.f32 %v296
        %vm303 = vmor %vm301, %vm302
        %v304 = vsel %vm303, %v296, %v300
        %v305 = vand.u32 2147483647, %v250
        %vm306 = vcmp.eq.f32.partialorder %v305, 8.507059e+37
        %v307 = vand.u32 %v250, 2147483648
        %v308 = vor.u32 1.1754944e-38, %v307
        %v309 = vsel %vm306, %v308, %v304
        %v310 = vmul.f32 3.0, %v309
        %v311 = vsub.f32 %v162, %v185
        %v312 = vsub.f32 %v163, %v192
        %v313 = vsub.f32 %v164, %v199
        %v314 = vsub.f32 %v165, %v206
        %v315 = vmul.f32 %v311, %v265
        %v316 = vmul.f32 %v312, %v280
        %v317 = vmul.f32 %v313, %v295
        %v318 = vmul.f32 %v314, %v310
        %v319 = vround.ne.pseudo %v315
        %v320 = vround.ne.pseudo %v316
        %v321 = vround.ne.pseudo %v317
        %v322 = vround.ne.pseudo %v318
        %vm323 = vcmp.eq.f32.partialorder %v319, 2.0
        %vm324 = vcmp.eq.f32.partialorder %v320, 2.0
        %vm325 = vcmp.eq.f32.partialorder %v321, 2.0
        %vm326 = vcmp.eq.f32.partialorder %v322, 2.0
        %v327 = vsel %vm323, 1, 0
        %v328 = vsel %vm324, 1, 0
        %v329 = vsel %vm325, 1, 0
        %v330 = vsel %vm326, 1, 0
        %v331 = vcvt.s32.f32 %v327
        %v332 = vcvt.s32.f32 %v328
        %v333 = vcvt.s32.f32 %v329
        %v334 = vcvt.s32.f32 %v330
        %v335 = vsel %vm166, %v331, 0.0
        %336 = vadd.xlane.f32.xlu0 %v335
        %v337 = vpop.xlane.xlu0 %336
        %v338 = vsel %vm166, %v332, 0.0
        %339 = vadd.xlane.f32.xlu0 %v338
        %v340 = vpop.xlane.xlu0 %339
        %v341 = vsel %vm166, %v333, 0.0
        %342 = vadd.xlane.f32.xlu0 %v341
        %v343 = vpop.xlane.xlu0 %342
        %v344 = vsel %vm166, %v334, 0.0
        %345 = vadd.xlane.f32.xlu0 %v344
        %v346 = vpop.xlane.xlu0 %345
        %v347 = vsel %vm166, %v337, 0.0
        %v348 = vrot.slane %v347, 4
        %v349 = vadd.f32 %v347, %v348
        %v350 = vrot.slane %v349, 2
        %v351 = vadd.f32 %v349, %v350
        %v352 = vrot.slane %v351, 1
        %v353 = vadd.f32 %v351, %v352
        %v354 = vsel %vm166, %v340, 0.0
        %v355 = vrot.slane %v354, 4
        %v356 = vadd.f32 %v354, %v355
        %v357 = vrot.slane %v356, 2
        %v358 = vadd.f32 %v356, %v357
        %v359 = vrot.slane %v358, 1
        %v360 = vadd.f32 %v358, %v359
        %v361 = vsel %vm166, %v343, 0.0
        %v362 = vrot.slane %v361, 4
        %v363 = vadd.f32 %v361, %v362
        %v364 = vrot.slane %v363, 2
        %v365 = vadd.f32 %v363, %v364
        %v366 = vrot.slane %v365, 1
        %v367 = vadd.f32 %v365, %v366
        %v368 = vsel %vm166, %v346, 0.0
        %v369 = vrot.slane %v368, 4
        %v370 = vadd.f32 %v368, %v369
        %v371 = vrot.slane %v370, 2
        %v372 = vadd.f32 %v370, %v371
        %v373 = vrot.slane %v372, 1
        %v374 = vadd.f32 %v372, %v373
        %v375 = vadd.f32 %v353, %v360
        %v376 = vadd.f32 %v375, %v367
        %v377 = vadd.f32 %v376, %v374
        %v378 = vld [vmem:[#allocation2] sm:$0x1]
        %v379 = vadd.f32 %v378, %v377
        %380 = vst [vmem:[#allocation2] sm:$0x1] %v379
        // Predicated region
        $region33: #{tpu_custom_call.1} parent=23 // pred_check
          %p381 = pneg %p153
        $region34: #{tpu_custom_call.1} parent=23 // pred_check_branch
          %383 = sbr.rel (%p381) target = $region36
        $region35: #{tpu_custom_call.1} parent=23 // pred_region
          %v384 = vld [vmem:[#allocation2] sm:$0x1]
          %385 = vst [vmem:[%s151] sm:$0x1] %v384
        $region36: #{tpu_custom_call.1} parent=23 // pred_fallthru
          _
        %s386 = sand.u32 %s66, 1
        %s387 = scalar_lea.sflag [#allocation5], %s386
        %s388 = sand.u32 %s66, 1
        %s389 = scalar_lea.vmem [#allocation6], %s388
        // Predicated region
        $region37: #{tpu_custom_call.1} parent=23 // pred_check
          %p390 = pneg %p76
        $region38: #{tpu_custom_call.1} parent=23 // pred_check_branch
          %392 = sbr.rel (%p390) target = $region40
        $region39: #{tpu_custom_call.1} parent=23 // pred_region
          %394 = vsyncadd %s387, 0
          %s395 = scalar_lea.hbm %s1, %s22
          %s397 = sshll.u32 %s389, 4
          %s398 = int_to_ptr.vmem [resolvable:$true] %s397
          %s399 = sshll.u32 %s395, 4
          %s400 = int_to_ptr.hbm [resolvable:$true] %s399
          %402 = dma.vmem_to_hbm [thread:$0]  %s398, 16, %s400, %s387
        $region40: #{tpu_custom_call.1} parent=23 // pred_fallthru
          _
      $region24: #{tpu_custom_call.1} parent=5 // pred_fallthru
        _
      %p403 = scmp.le.s32.totalorder 2, %s13
      // Predicated region
      $region41: #{tpu_custom_call.1} parent=5 // pred_check
        %p404 = pneg %p403
      $region42: #{tpu_custom_call.1} parent=5 // pred_check_branch
        %406 = sbr.rel (%p404) target = $region44
      $region43: #{tpu_custom_call.1} parent=5 // pred_region
        %s407 = ssub.s32 %s13, 2
        // Predicated region
        $region45: #{tpu_custom_call.1} parent=43 // pred_check
          %p408 = pneg %p82
        $region46: #{tpu_custom_call.1} parent=43 // pred_check_branch
          %410 = sbr.rel (%p408) target = $region48
        $region47: #{tpu_custom_call.1} parent=43 // pred_region
          %s411 = sand.u32 %s67, 1
          %s412 = scalar_lea.sflag [#allocation5], %s411
          %s413 = sand.u32 %s67, 1
          %s414 = scalar_lea.vmem [#allocation6], %s413
          %416 = dma.done %s412, 16
        $region48: #{tpu_custom_call.1} parent=43 // pred_fallthru
          _
      $region44: #{tpu_custom_call.1} parent=5 // pred_fallthru
        _
    $region6: #{tpu_custom_call.1} parent=1 // loop_footer
      %s17 = sadd.s32 1, %s13
    $region7: #{tpu_custom_call.1} parent=1 // loop_footer_branch
      %12 = sbr.rel target = $region3
    $region8: #{tpu_custom_call.1} parent=1 // loop_exit
      _
    %417 = vsyncpa [#allocation4], 1
    %s418 = scalar_lea.sflag [#allocation4], 1
    %419 = vsyncpa %s418, 1
    %420 = vsyncpa [#allocation5], 1
    %s421 = scalar_lea.sflag [#allocation5], 1
    %422 = vsyncpa %s421, 1

</llo_original>
